<compile_context>
chip_gen: v7x
topology: tpu7x:2x2x1
jax: 0.10.0
libtpu: 0.0.40
codegen_flags: <defaults>
</compile_context>

<pallas_src>
import jax
import jax.numpy as jnp
from jax import lax
from jax.experimental import pallas as pl
from jax.experimental.pallas import tpu as pltpu


def _proj_disc_kernel(x_ref, y_ref, w1_ref, b1_ref, w2_ref, b2_ref,
                      w3_ref, b3_ref, emb_ref, o_ref):
    B = x_ref.shape[0]
    C = emb_ref.shape[0]

    x = x_ref[...]                                            # (B, F) f32

    # fc1 -> ReLU   (bf16 weights, f32 accumulate)
    x1 = jnp.dot(x, w1_ref[...].astype(jnp.float32),
                 preferred_element_type=jnp.float32) + b1_ref[...]
    h1 = jnp.maximum(x1, 0.0)

    # fc2 (no activation after it, per the module)
    x2 = jnp.dot(h1, w2_ref[...].astype(jnp.float32),
                 preferred_element_type=jnp.float32) + b2_ref[...]

    # linear(x2): weight passed as a (1, F) row -> VPU mul + lane reduction
    # instead of an (F, 1) MXU matmul.
    h = jnp.sum(x2 * w3_ref[...], axis=-1, keepdims=True) + b3_ref[...]

    # Embedding lookup fused as a one-hot matmul (exact row gather in f32).
    # TODO(synk): for large num_classes, replace with a DMA row-gather instead
    #             of materializing the (B, C) one-hot.
    y = y_ref[...]                                            # (B, 1) int32
    onehot = (y == lax.broadcasted_iota(jnp.int32, (B, C), 1)).astype(jnp.float32)
    e = jnp.dot(onehot, emb_ref[...].astype(jnp.float32),
                preferred_element_type=jnp.float32)           # (B, F)

    inner = jnp.sum(x2 * e, axis=-1, keepdims=True)           # (B, 1)
    o_ref[...] = (h + inner).astype(o_ref.dtype)


def projection_discriminator(x, y, params):
    """x: (B, F) float32, y: (B,) int32 class ids. Returns (B, 1) float32."""
    w1, b1, w2, b2, w3_row, b3, emb = params
    B, F = x.shape
    y2d = y.reshape(B, 1).astype(jnp.int32)

    vmem = pl.BlockSpec(memory_space=pltpu.MemorySpace.VMEM)

    return pl.pallas_call(
        _proj_disc_kernel,
        out_shape=jax.ShapeDtypeStruct((B, 1), jnp.float32),
        in_specs=[vmem] * 9,
        out_specs=vmem,
    )(x, y2d, w1, b1, w2, b2, w3_row, b3, emb)


def init_params(key, num_classes, in_features):
    """Deterministic synthetic init mirroring the module's parameter shapes.

    Weights are stored transposed vs torch, i.e. (in, out), so the kernel
    computes y = x @ W + b directly.  w1/w2/embedding are stored in bf16
    (f32 accumulation in the kernel); biases and the (1, F) last-layer row
    stay f32.  Last layer: weight ~ N(0, 0.3) clamped to [-0.6, 0.6], bias 0.
    """
    k1, k2, k3, k4 = jax.random.split(key, 4)
    F = in_features
    w1 = (jax.random.normal(k1, (F, F), jnp.float32) * 0.05).astype(jnp.bfloat16)
    b1 = jnp.zeros((1, F), jnp.float32)
    w2 = (jax.random.normal(k2, (F, F), jnp.float32) * 0.05).astype(jnp.bfloat16)
    b2 = jnp.zeros((1, F), jnp.float32)
    w3_row = jnp.clip(jax.random.normal(k3, (1, F), jnp.float32) * 0.3, -0.6, 0.6)
    b3 = jnp.zeros((1, 1), jnp.float32)
    emb = (jax.random.normal(k4, (num_classes, F), jnp.float32) * 0.05).astype(jnp.bfloat16)
    return (w1, b1, w2, b2, w3_row, b3, emb)


def reference_forward(x, y, params):
    w1, b1, w2, b2, w3_row, b3, emb = params
    w1f = w1.astype(jnp.float32)
    w2f = w2.astype(jnp.float32)
    embf = emb.astype(jnp.float32)
    x1 = x @ w1f + b1
    x2 = jnp.maximum(x1, 0.0) @ w2f + b2
    h = x2 @ w3_row.T + b3
    e = embf[y]                                   # (B, F)
    inner = jnp.sum(x2 * e, axis=1, keepdims=True)
    return h + inner


if __name__ == "__main__":
    num_classes = 8
    in_features = 32
    batch = 4

    key = jax.random.PRNGKey(0)
    kx, ky, kp = jax.random.split(key, 3)
    x = jax.random.normal(kx, (batch, in_features), jnp.float32)
    y = jax.random.randint(ky, (batch,), 0, num_classes, jnp.int32)
    params = init_params(kp, num_classes, in_features)

    out = projection_discriminator(x, y, params)
    out = jax.block_until_ready(out)

    ref = reference_forward(x, y, params)
    assert out.shape == (batch, 1), out.shape
    assert jnp.allclose(out, ref, atol=1e-4, rtol=1e-4), "mismatch vs reference"

    print("KERNEL_OK")
</pallas_src>

<mosaic_0001>
module attributes {stable_mosaic.version = 11 : i64} {
  func.func @_proj_disc_kernel(%arg0: memref<4x32xf32, #tpu.memory_space<vmem>>, %arg1: memref<4x1xi32, #tpu.memory_space<vmem>>, %arg2: memref<32x32xbf16, #tpu.memory_space<vmem>>, %arg3: memref<1x32xf32, #tpu.memory_space<vmem>>, %arg4: memref<32x32xbf16, #tpu.memory_space<vmem>>, %arg5: memref<1x32xf32, #tpu.memory_space<vmem>>, %arg6: memref<1x32xf32, #tpu.memory_space<vmem>>, %arg7: memref<1x1xf32, #tpu.memory_space<vmem>>, %arg8: memref<8x32xbf16, #tpu.memory_space<vmem>>, %arg9: memref<4x1xf32, #tpu.memory_space<vmem>>) attributes {dimension_semantics = [], scalar_prefetch = 0 : i64, scratch_operands = 0 : i64, tpu.core_type = #tpu.core_type<tc>} {
    %c0 = arith.constant 0 : index
    %c0_0 = arith.constant 0 : index
    %0 = vector.load %arg0[%c0, %c0_0] : memref<4x32xf32, #tpu.memory_space<vmem>>, vector<4x32xf32>
    %c0_1 = arith.constant 0 : index
    %c0_2 = arith.constant 0 : index
    %1 = vector.load %arg2[%c0_1, %c0_2] : memref<32x32xbf16, #tpu.memory_space<vmem>>, vector<32x32xbf16>
    %2 = arith.extf %1 : vector<32x32xbf16> to vector<32x32xf32>
    %cst = arith.constant dense<0.000000e+00> : vector<4x32xf32>
    %3 = tpu.matmul %0, %2, %cst {dimension_numbers = #tpu.dot_dimension_numbers<[1], [0], [0], [1], [0, 0, 1, 1], [], []>} : vector<4x32xf32>, vector<32x32xf32>, vector<4x32xf32> -> vector<4x32xf32>
    %c0_3 = arith.constant 0 : index
    %c0_4 = arith.constant 0 : index
    %4 = vector.load %arg3[%c0_3, %c0_4] : memref<1x32xf32, #tpu.memory_space<vmem>>, vector<1x32xf32>
    %5 = vector.broadcast %4 : vector<1x32xf32> to vector<4x32xf32>
    %6 = arith.addf %3, %5 : vector<4x32xf32>
    %cst_5 = arith.constant 0.000000e+00 : f32
    %7 = vector.broadcast %cst_5 : f32 to vector<4x32xf32>
    %8 = arith.maximumf %6, %7 : vector<4x32xf32>
    %c0_6 = arith.constant 0 : index
    %c0_7 = arith.constant 0 : index
    %9 = vector.load %arg4[%c0_6, %c0_7] : memref<32x32xbf16, #tpu.memory_space<vmem>>, vector<32x32xbf16>
    %10 = arith.extf %9 : vector<32x32xbf16> to vector<32x32xf32>
    %cst_8 = arith.constant dense<0.000000e+00> : vector<4x32xf32>
    %11 = tpu.matmul %8, %10, %cst_8 {dimension_numbers = #tpu.dot_dimension_numbers<[1], [0], [0], [1], [0, 0, 1, 1], [], []>} : vector<4x32xf32>, vector<32x32xf32>, vector<4x32xf32> -> vector<4x32xf32>
    %c0_9 = arith.constant 0 : index
    %c0_10 = arith.constant 0 : index
    %12 = vector.load %arg5[%c0_9, %c0_10] : memref<1x32xf32, #tpu.memory_space<vmem>>, vector<1x32xf32>
    %13 = vector.broadcast %12 : vector<1x32xf32> to vector<4x32xf32>
    %14 = arith.addf %11, %13 : vector<4x32xf32>
    %c0_11 = arith.constant 0 : index
    %c0_12 = arith.constant 0 : index
    %15 = vector.load %arg6[%c0_11, %c0_12] : memref<1x32xf32, #tpu.memory_space<vmem>>, vector<1x32xf32>
    %16 = vector.broadcast %15 : vector<1x32xf32> to vector<4x32xf32>
    %17 = arith.mulf %14, %16 : vector<4x32xf32>
    %cst_13 = arith.constant dense<0.000000e+00> : vector<4xf32>
    %18 = vector.multi_reduction <add>, %17, %cst_13 [1] : vector<4x32xf32> to vector<4xf32>
    %19 = vector.shape_cast %18 : vector<4xf32> to vector<4x1xf32>
    %c0_14 = arith.constant 0 : index
    %c0_15 = arith.constant 0 : index
    %20 = vector.load %arg7[%c0_14, %c0_15] : memref<1x1xf32, #tpu.memory_space<vmem>>, vector<1x1xf32>
    %21 = vector.broadcast %20 : vector<1x1xf32> to vector<4x1xf32>
    %22 = arith.addf %19, %21 : vector<4x1xf32>
    %c0_16 = arith.constant 0 : index
    %c0_17 = arith.constant 0 : index
    %23 = vector.load %arg1[%c0_16, %c0_17] : memref<4x1xi32, #tpu.memory_space<vmem>>, vector<4x1xi32>
    %24 = tpu.iota {dimensions = array<i32: 1>} : vector<4x8xi32>
    %25 = vector.broadcast %23 : vector<4x1xi32> to vector<4x8xi32>
    %26 = arith.cmpi eq, %25, %24 : vector<4x8xi32>
    %27 = arith.extui %26 : vector<4x8xi1> to vector<4x8xi32>
    %28 = arith.sitofp %27 : vector<4x8xi32> to vector<4x8xf32>
    %c0_18 = arith.constant 0 : index
    %c0_19 = arith.constant 0 : index
    %29 = vector.load %arg8[%c0_18, %c0_19] : memref<8x32xbf16, #tpu.memory_space<vmem>>, vector<8x32xbf16>
    %30 = arith.extf %29 : vector<8x32xbf16> to vector<8x32xf32>
    %cst_20 = arith.constant dense<0.000000e+00> : vector<4x32xf32>
    %31 = tpu.matmul %28, %30, %cst_20 {dimension_numbers = #tpu.dot_dimension_numbers<[1], [0], [0], [1], [0, 0, 1, 1], [], []>} : vector<4x8xf32>, vector<8x32xf32>, vector<4x32xf32> -> vector<4x32xf32>
    %32 = arith.mulf %14, %31 : vector<4x32xf32>
    %cst_21 = arith.constant dense<0.000000e+00> : vector<4xf32>
    %33 = vector.multi_reduction <add>, %32, %cst_21 [1] : vector<4x32xf32> to vector<4xf32>
    %34 = vector.shape_cast %33 : vector<4xf32> to vector<4x1xf32>
    %35 = arith.addf %22, %34 : vector<4x1xf32>
    %c0_22 = arith.constant 0 : index
    %c0_23 = arith.constant 0 : index
    %36 = vector.load %arg9[%c0_22, %c0_23] : memref<4x1xf32, #tpu.memory_space<vmem>>, vector<4x1xf32>
    tpu.vector_store %arg9[%c0_22, %c0_23], %35 {strides = array<i32>} : memref<4x1xf32, #tpu.memory_space<vmem>>, vector<4x1xf32>,
    return
  }
}

</mosaic_0001>

<llo_original>
// kernel: tpu_custom_call.1
$region0: #{tpu_custom_call.1}
  #allocation0 [shape = 'u32[]', space=smem, size = 0x4, offset = 0x4, fixed_abs, tag = 'smem constant byte address 0x4 - core index']
  #allocation1 [shape = 'u32[144,128]{1,0:T(1,128)}', space=vmem, size = 0x12000, scoped, tag = 'internal scratch']
  #allocation2 [shape = 'f32[1,1]{1,0:T(1,128)S(1)}', space=vmem, size = 0x200, scoped, tag = 'scoped memory for tpu_custom_call.1']
  %s0 = inlined_call_operand.hbm [shape: f32[4,32], index: 0, kind: input, shape index: {}]
  %s1 = inlined_call_operand.vmem [shape: s32[4,1], index: 1, kind: input, shape index: {}]
  %s2 = inlined_call_operand.vmem [shape: bf16[32,32], index: 2, kind: input, shape index: {}]
  %s3 = inlined_call_operand.hbm [shape: f32[1,32], index: 3, kind: input, shape index: {}]
  %s4 = inlined_call_operand.hbm [shape: bf16[32,32], index: 4, kind: input, shape index: {}]
  %s5 = inlined_call_operand.vmem [shape: f32[1,32], index: 5, kind: input, shape index: {}]
  %s6 = inlined_call_operand.vmem [shape: f32[1,32], index: 6, kind: input, shape index: {}]
  %s7 = inlined_call_operand.<no memory space> [shape: f32[1,1], index: 7, kind: input, shape index: {}]
  %s8 = inlined_call_operand.vmem [shape: bf16[8,32], index: 8, kind: input, shape index: {}]
  %s9 = inlined_call_operand.vmem [shape: f32[4,1], index: 9, kind: output, shape index: {}]
  %s10 = sld [smem:[#allocation0]]
  $region58: #{tpu_custom_call.1} parent=0
    _
  %s12 = ssub.s32 1, %s10
  %s13 = scalar_select 0, %s12, %s10
  %v14 = vstv %s7
  %15 = vst [vmem:[#allocation2] sm:$0x1] %v14
  $region1: #{tpu_custom_call.1} parent=0
    #allocation3 [shape = 'u8[2048]{0}', space=vmem, size = 0x800, scoped, tag = 'input window, operand 0, single buffered']
    #allocation4 [shape = 's32[1]{0}', space=sflag, size = 0x4, scoped, tag = 'scoped memory for tpu_custom_call.1']
    #allocation5 [shape = 'u8[512]{0}', space=vmem, size = 0x400, scoped, tag = 'input window, operand 3, single buffered']
    #allocation6 [shape = 's32[1]{0}', space=sflag, size = 0x4, scoped, tag = 'scoped memory for tpu_custom_call.1']
    #allocation7 [shape = 'u8[8192]{0}', space=vmem, size = 0x2000, scoped, tag = 'input window, operand 4, single buffered']
    %16 = vsyncpa [#allocation4], 0
    %17 = vsyncpa [#allocation6], 0
    // Predicated region
    $region2: #{tpu_custom_call.1} parent=1 // pred_check
      _
    $region3: #{tpu_custom_call.1} parent=1 // pred_check_branch
      %19 = sbr.rel (0) target = $region5
    $region4: #{tpu_custom_call.1} parent=1 // pred_region
      %s21 = ssub.s32 64, 64
      %22 = vsyncadd [#allocation4], %s21
      %s24 = sshll.u32 [#allocation3], 4
      %s25 = int_to_ptr.vmem [resolvable:$true] %s24
      %27 = dma.hbm_to_vmem [thread:$0]  %s0, 64, %s25, [#allocation4]
    $region5: #{tpu_custom_call.1} parent=1 // pred_fallthru
      _
    // Predicated region
    $region6: #{tpu_custom_call.1} parent=1 // pred_check
      _
    $region7: #{tpu_custom_call.1} parent=1 // pred_check_branch
      %29 = sbr.rel (0) target = $region9
    $region8: #{tpu_custom_call.1} parent=1 // pred_region
      _
    $region9: #{tpu_custom_call.1} parent=1 // pred_fallthru
      _
    // Predicated region
    $region10: #{tpu_custom_call.1} parent=1 // pred_check
      _
    $region11: #{tpu_custom_call.1} parent=1 // pred_check_branch
      %31 = sbr.rel (0) target = $region13
    $region12: #{tpu_custom_call.1} parent=1 // pred_region
      _
    $region13: #{tpu_custom_call.1} parent=1 // pred_fallthru
      _
    // Predicated region
    $region14: #{tpu_custom_call.1} parent=1 // pred_check
      _
    $region15: #{tpu_custom_call.1} parent=1 // pred_check_branch
      %33 = sbr.rel (0) target = $region17
    $region16: #{tpu_custom_call.1} parent=1 // pred_region
      %s35 = ssub.s32 16, 16
      %36 = vsyncadd [#allocation6], %s35
      %s38 = sshll.u32 [#allocation5], 4
      %s39 = int_to_ptr.vmem [resolvable:$true] %s38
      %41 = dma.hbm_to_vmem [thread:$0]  %s3, 16, %s39, [#allocation6]
    $region17: #{tpu_custom_call.1} parent=1 // pred_fallthru
      _
    // Predicated region
    $region18: #{tpu_custom_call.1} parent=1 // pred_check
      _
    $region19: #{tpu_custom_call.1} parent=1 // pred_check_branch
      %43 = sbr.rel (0) target = $region21
    $region20: #{tpu_custom_call.1} parent=1 // pred_region
      %s45 = ssub.s32 256, 256
      %46 = vsyncadd [#allocation6], %s45
      %s47 = sshll.u32 [#allocation7], 4
      %s48 = int_to_ptr.vmem [resolvable:$true] %s47
      %53 = dma.hbm_to_vmem [thread:$0]  %s4, 256, %s48, [#allocation6], 64, 64, 4
    $region21: #{tpu_custom_call.1} parent=1 // pred_fallthru
      _
    // Predicated region
    $region22: #{tpu_custom_call.1} parent=1 // pred_check
      _
    $region23: #{tpu_custom_call.1} parent=1 // pred_check_branch
      %55 = sbr.rel (0) target = $region25
    $region24: #{tpu_custom_call.1} parent=1 // pred_region
      _
    $region25: #{tpu_custom_call.1} parent=1 // pred_fallthru
      _
    // Predicated region
    $region26: #{tpu_custom_call.1} parent=1 // pred_check
      _
    $region27: #{tpu_custom_call.1} parent=1 // pred_check_branch
      %57 = sbr.rel (0) target = $region29
    $region28: #{tpu_custom_call.1} parent=1 // pred_region
      _
    $region29: #{tpu_custom_call.1} parent=1 // pred_fallthru
      _
    // Predicated region
    $region30: #{tpu_custom_call.1} parent=1 // pred_check
      _
    $region31: #{tpu_custom_call.1} parent=1 // pred_check_branch
      %59 = sbr.rel (0) target = $region33
    $region32: #{tpu_custom_call.1} parent=1 // pred_region
      _
    $region33: #{tpu_custom_call.1} parent=1 // pred_fallthru
      _
    // Predicated region
    $region34: #{tpu_custom_call.1} parent=1 // pred_check
      _
    $region35: #{tpu_custom_call.1} parent=1 // pred_check_branch
      %61 = sbr.rel (0) target = $region37
    $region36: #{tpu_custom_call.1} parent=1 // pred_region
      _
    $region37: #{tpu_custom_call.1} parent=1 // pred_fallthru
      _
    // Predicated region
    $region38: #{tpu_custom_call.1} parent=1 // pred_check
      _
    $region39: #{tpu_custom_call.1} parent=1 // pred_check_branch
      %63 = sbr.rel (0) target = $region41
    $region40: #{tpu_custom_call.1} parent=1 // pred_region
      %64 = dma.done [#allocation4], 64
    $region41: #{tpu_custom_call.1} parent=1 // pred_fallthru
      _
    // Predicated region
    $region42: #{tpu_custom_call.1} parent=1 // pred_check
      _
    $region43: #{tpu_custom_call.1} parent=1 // pred_check_branch
      %66 = sbr.rel (0) target = $region45
    $region44: #{tpu_custom_call.1} parent=1 // pred_region
      %67 = dma.done [#allocation6], 16
    $region45: #{tpu_custom_call.1} parent=1 // pred_fallthru
      _
    // Predicated region
    $region46: #{tpu_custom_call.1} parent=1 // pred_check
      _
    $region47: #{tpu_custom_call.1} parent=1 // pred_check_branch
      %69 = sbr.rel (0) target = $region49
    $region48: #{tpu_custom_call.1} parent=1 // pred_region
      %70 = dma.done [#allocation6], 256
    $region49: #{tpu_custom_call.1} parent=1 // pred_fallthru
      _
    %v71 = vld [vmem:[#allocation3] sm:$0xf]
    %v72 = vld [vmem:[%s2] sm:$0xf]
    %v73 = vld [vmem:[%s2 + $0x4] sm:$0xf]
    %v74 = vld [vmem:[%s2 + $0x8] sm:$0xf]
    %v75 = vld [vmem:[%s2 + $0xc] sm:$0xf]
    %v76 = vunpack.c.l.bf16 %v72
    %v77 = vunpack.c.l.bf16 %v73
    %v78 = vunpack.c.l.bf16 %v74
    %v79 = vunpack.c.l.bf16 %v75
    %v80 = vld [vmem:[#allocation5] sm:$0x1]
    %v82 = vlaneseq
    %v83 = vshrl.u32 %v82, 7
    %v84 = vsub.s32 0, %v83
    %v85 = vrot.slane %v80, %v84
    %vm87 = vcmask 261120
    %v89 = vsel %vm87, %v71, 0
    %91 = vmatprep.subr.mxu0 0.0
    %92 = vmatpush1.msra.mxu0 %v76
    %93 = vmatprep.subr.mxu0 0.0
    %94 = vmatpush1.msra.mxu0 %v77
    %95 = vmatprep.subr.mxu0 0.0
    %96 = vmatpush1.msra.mxu0 %v78
    %97 = vmatprep.subr.mxu0 0.0
    %98 = vmatpush1.msra.mxu0 %v79
    %99 = vmatprep.subr.mxu0 0.0
    %100 = vmatpush1.msra.mxu0 0.0
    %101 = vmatprep.subr.mxu0 0.0
    %102 = vmatpush1.msra.mxu0 0.0
    %103 = vmatprep.subr.mxu0 0.0
    %104 = vmatpush1.msra.mxu0 0.0
    %105 = vmatprep.subr.mxu0 0.0
    %106 = vmatpush1.msra.mxu0 0.0
    %107 = vmatprep.subr.mxu0 0.0
    %108 = vmatpush1.msra.mxu0 0.0
    %109 = vmatprep.subr.mxu0 0.0
    %110 = vmatpush1.msra.mxu0 0.0
    %111 = vmatprep.subr.mxu0 0.0
    %112 = vmatpush1.msra.mxu0 0.0
    %113 = vmatprep.subr.mxu0 0.0
    %114 = vmatpush1.msra.mxu0 0.0
    %115 = vmatprep.subr.mxu0 0.0
    %116 = vmatpush1.msra.mxu0 0.0
    %117 = vmatprep.subr.mxu0 0.0
    %118 = vmatpush1.msra.mxu0 0.0
    %119 = vmatprep.subr.mxu0 0.0
    %120 = vmatpush1.msra.mxu0 0.0
    %121 = vmatprep.subr.mxu0 0.0
    %122 = vmatpush1.msra.mxu0 0.0
    %123 = vmatprep.subr.mxu0 0.0
    %124 = vmatpush1.msra.mxu0 0.0
    %125 = vmatprep.subr.mxu0 0.0
    %126 = vmatpush1.msra.mxu0 0.0
    %127 = vmatprep.subr.mxu0 0.0
    %128 = vmatpush1.msra.mxu0 0.0
    %129 = vmatprep.subr.mxu0 0.0
    %130 = vmatpush1.msra.mxu0 0.0
    %131 = vmatprep.subr.mxu0 0.0
    %132 = vmatpush1.msra.mxu0 0.0
    %133 = vmatprep.subr.mxu0 0.0
    %134 = vmatpush1.msra.mxu0 0.0
    %135 = vmatprep.subr.mxu0 0.0
    %136 = vmatpush1.msra.mxu0 0.0
    %137 = vmatprep.subr.mxu0 0.0
    %138 = vmatpush1.msra.mxu0 0.0
    %139 = vmatprep.subr.mxu0 0.0
    %140 = vmatpush1.msra.mxu0 0.0
    %141 = vmatprep.subr.mxu0 0.0
    %142 = vmatpush1.msra.mxu0 0.0
    %143 = vmatprep.subr.mxu0 0.0
    %144 = vmatpush1.msra.mxu0 0.0
    %145 = vmatprep.subr.mxu0 0.0
    %146 = vmatpush1.msra.mxu0 0.0
    %147 = vmatprep.subr.mxu0 0.0
    %148 = vmatpush1.msra.mxu0 0.0
    %149 = vmatprep.subr.mxu0 0.0
    %150 = vmatpush1.msra.mxu0 0.0
    %151 = vmatprep.subr.mxu0 0.0
    %152 = vmatpush1.msra.mxu0 0.0
    %153 = vmatprep.subr.mxu0 0.0
    %154 = vmatpush1.msra.mxu0 0.0
    %155 = vmatprep.mubr.f32.mxu0 0.0
    %156 = vmatmul.mubr.f32.gmra.mrb[0].mxu0 %v89
    %v157 = vpop.f32.mrb[0].mxu0
    %v158 = vadd.f32 %v85, %v157
    %v159 = vpop.f32.mrb[0].mxu0
    %160 = vdwg.mxu0
    %v161 = vmax.f32 %v158, 0.0
    %v162 = vld [vmem:[#allocation7] sm:$0xf]
    %v163 = vld [vmem:[#allocation7 + $0x4] sm:$0xf]
    %v164 = vld [vmem:[#allocation7 + $0x8] sm:$0xf]
    %v165 = vld [vmem:[#allocation7 + $0xc] sm:$0xf]
    %v166 = vunpack.c.l.bf16 %v162
    %v167 = vunpack.c.l.bf16 %v163
    %v168 = vunpack.c.l.bf16 %v164
    %v169 = vunpack.c.l.bf16 %v165
    %v170 = vld [vmem:[%s5] sm:$0x1]
    %v172 = vlaneseq
    %v173 = vshrl.u32 %v172, 7
    %v174 = vsub.s32 0, %v173
    %v175 = vrot.slane %v170, %v174
    %v178 = vsel %vm87, %v161, 0
    %180 = vmatprep.subr.mxu0 0.0
    %181 = vmatpush1.msra.mxu0 %v166
    %182 = vmatprep.subr.mxu0 0.0
    %183 = vmatpush1.msra.mxu0 %v167
    %184 = vmatprep.subr.mxu0 0.0
    %185 = vmatpush1.msra.mxu0 %v168
    %186 = vmatprep.subr.mxu0 0.0
    %187 = vmatpush1.msra.mxu0 %v169
    %188 = vmatprep.subr.mxu0 0.0
    %189 = vmatpush1.msra.mxu0 0.0
    %190 = vmatprep.subr.mxu0 0.0
    %191 = vmatpush1.msra.mxu0 0.0
    %192 = vmatprep.subr.mxu0 0.0
    %193 = vmatpush1.msra.mxu0 0.0
    %194 = vmatprep.subr.mxu0 0.0
    %195 = vmatpush1.msra.mxu0 0.0
    %196 = vmatprep.subr.mxu0 0.0
    %197 = vmatpush1.msra.mxu0 0.0
    %198 = vmatprep.subr.mxu0 0.0
    %199 = vmatpush1.msra.mxu0 0.0
    %200 = vmatprep.subr.mxu0 0.0
    %201 = vmatpush1.msra.mxu0 0.0
    %202 = vmatprep.subr.mxu0 0.0
    %203 = vmatpush1.msra.mxu0 0.0
    %204 = vmatprep.subr.mxu0 0.0
    %205 = vmatpush1.msra.mxu0 0.0
    %206 = vmatprep.subr.mxu0 0.0
    %207 = vmatpush1.msra.mxu0 0.0
    %208 = vmatprep.subr.mxu0 0.0
    %209 = vmatpush1.msra.mxu0 0.0
    %210 = vmatprep.subr.mxu0 0.0
    %211 = vmatpush1.msra.mxu0 0.0
    %212 = vmatprep.subr.mxu0 0.0
    %213 = vmatpush1.msra.mxu0 0.0
    %214 = vmatprep.subr.mxu0 0.0
    %215 = vmatpush1.msra.mxu0 0.0
    %216 = vmatprep.subr.mxu0 0.0
    %217 = vmatpush1.msra.mxu0 0.0
    %218 = vmatprep.subr.mxu0 0.0
    %219 = vmatpush1.msra.mxu0 0.0
    %220 = vmatprep.subr.mxu0 0.0
    %221 = vmatpush1.msra.mxu0 0.0
    %222 = vmatprep.subr.mxu0 0.0
    %223 = vmatpush1.msra.mxu0 0.0
    %224 = vmatprep.subr.mxu0 0.0
    %225 = vmatpush1.msra.mxu0 0.0
    %226 = vmatprep.subr.mxu0 0.0
    %227 = vmatpush1.msra.mxu0 0.0
    %228 = vmatprep.subr.mxu0 0.0
    %229 = vmatpush1.msra.mxu0 0.0
    %230 = vmatprep.subr.mxu0 0.0
    %231 = vmatpush1.msra.mxu0 0.0
    %232 = vmatprep.subr.mxu0 0.0
    %233 = vmatpush1.msra.mxu0 0.0
    %234 = vmatprep.subr.mxu0 0.0
    %235 = vmatpush1.msra.mxu0 0.0
    %236 = vmatprep.subr.mxu0 0.0
    %237 = vmatpush1.msra.mxu0 0.0
    %238 = vmatprep.subr.mxu0 0.0
    %239 = vmatpush1.msra.mxu0 0.0
    %240 = vmatprep.subr.mxu0 0.0
    %241 = vmatpush1.msra.mxu0 0.0
    %242 = vmatprep.subr.mxu0 0.0
    %243 = vmatpush1.msra.mxu0 0.0
    %244 = vmatprep.mubr.f32.mxu0 0.0
    %245 = vmatmul.mubr.f32.gmra.mrb[0].mxu0 %v178
    %v246 = vpop.f32.mrb[0].mxu0
    %v247 = vadd.f32 %v175, %v246
    %v248 = vpop.f32.mrb[0].mxu0
    %249 = vdwg.mxu0
    %v250 = vld [vmem:[%s6] sm:$0x1]
    %v252 = vlaneseq
    %v253 = vshrl.u32 %v252, 7
    %v254 = vsub.s32 0, %v253
    %v255 = vrot.slane %v250, %v254
    %v257 = vmul.f32 %v247, %v255
    %vm258 = vcmask 257024
    %v259 = vsel %vm258, %v257, 0.0
    %260 = vadd.xlane.f32.xlu0 %v259
    %v261 = vpop.xlane.xlu0 %260
    %v262 = vld [vmem:[#allocation2] sm:$0x1]
    %v264 = vlaneseq
    %v265 = vshrl.u32 %v264, 7
    %v266 = vsub.s32 0, %v265
    %v267 = vrot.slane %v262, %v266
    %v269 = vadd.f32 %v261, %v267
    %v270 = vld [vmem:[%s1] sm:$0xf]
    %v271 = vlaneseq
    %v272 = vand.u32 %v271, 127
    %273 = vset.pattern.permute.xlu0 0
    %274 = vperm.xlu0 %273, %v270
    %v275 = vpop.permute.xlu0 %274
    %vm276 = vcmp.eq.s32.totalorder %v275, %v272
    %v277 = vsel %vm276, 1, 0
    %v278 = vcvt.s32.f32 %v277
    %v279 = vld [vmem:[%s8] sm:$0xf]
    %v280 = vunpack.c.l.bf16 %v279
    %vm281 = vcmask 64512
    %v283 = vsel %vm281, %v278, 0
    %285 = vmatprep.subr.mxu0 0.0
    %286 = vmatpush1.msra.mxu0 %v280
    %287 = vmatprep.subr.mxu0 0.0
    %288 = vmatpush1.msra.mxu0 0.0
    %289 = vmatprep.subr.mxu0 0.0
    %290 = vmatpush1.msra.mxu0 0.0
    %291 = vmatprep.subr.mxu0 0.0
    %292 = vmatpush1.msra.mxu0 0.0
    %293 = vmatprep.subr.mxu0 0.0
    %294 = vmatpush1.msra.mxu0 0.0
    %295 = vmatprep.subr.mxu0 0.0
    %296 = vmatpush1.msra.mxu0 0.0
    %297 = vmatprep.subr.mxu0 0.0
    %298 = vmatpush1.msra.mxu0 0.0
    %299 = vmatprep.subr.mxu0 0.0
    %300 = vmatpush1.msra.mxu0 0.0
    %301 = vmatprep.subr.mxu0 0.0
    %302 = vmatpush1.msra.mxu0 0.0
    %303 = vmatprep.subr.mxu0 0.0
    %304 = vmatpush1.msra.mxu0 0.0
    %305 = vmatprep.subr.mxu0 0.0
    %306 = vmatpush1.msra.mxu0 0.0
    %307 = vmatprep.subr.mxu0 0.0
    %308 = vmatpush1.msra.mxu0 0.0
    %309 = vmatprep.subr.mxu0 0.0
    %310 = vmatpush1.msra.mxu0 0.0
    %311 = vmatprep.subr.mxu0 0.0
    %312 = vmatpush1.msra.mxu0 0.0
    %313 = vmatprep.subr.mxu0 0.0
    %314 = vmatpush1.msra.mxu0 0.0
    %315 = vmatprep.subr.mxu0 0.0
    %316 = vmatpush1.msra.mxu0 0.0
    %317 = vmatprep.subr.mxu0 0.0
    %318 = vmatpush1.msra.mxu0 0.0
    %319 = vmatprep.subr.mxu0 0.0
    %320 = vmatpush1.msra.mxu0 0.0
    %321 = vmatprep.subr.mxu0 0.0
    %322 = vmatpush1.msra.mxu0 0.0
    %323 = vmatprep.subr.mxu0 0.0
    %324 = vmatpush1.msra.mxu0 0.0
    %325 = vmatprep.subr.mxu0 0.0
    %326 = vmatpush1.msra.mxu0 0.0
    %327 = vmatprep.subr.mxu0 0.0
    %328 = vmatpush1.msra.mxu0 0.0
    %329 = vmatprep.subr.mxu0 0.0
    %330 = vmatpush1.msra.mxu0 0.0
    %331 = vmatprep.subr.mxu0 0.0
    %332 = vmatpush1.msra.mxu0 0.0
    %333 = vmatprep.subr.mxu0 0.0
    %334 = vmatpush1.msra.mxu0 0.0
    %335 = vmatprep.subr.mxu0 0.0
    %336 = vmatpush1.msra.mxu0 0.0
    %337 = vmatprep.subr.mxu0 0.0
    %338 = vmatpush1.msra.mxu0 0.0
    %339 = vmatprep.subr.mxu0 0.0
    %340 = vmatpush1.msra.mxu0 0.0
    %341 = vmatprep.subr.mxu0 0.0
    %342 = vmatpush1.msra.mxu0 0.0
    %343 = vmatprep.subr.mxu0 0.0
    %344 = vmatpush1.msra.mxu0 0.0
    %345 = vmatprep.subr.mxu0 0.0
    %346 = vmatpush1.msra.mxu0 0.0
    %347 = vmatprep.subr.mxu0 0.0
    %348 = vmatpush1.msra.mxu0 0.0
    %349 = vmatprep.mubr.f32.mxu0 0.0
    %350 = vmatmul.mubr.f32.gmra.mrb[0].mxu0 %v283
    %v351 = vpop.f32.mrb[0].mxu0
    %v352 = vadd.f32 0.0, %v351
    %v353 = vpop.f32.mrb[0].mxu0
    %354 = vdwg.mxu0
    %v355 = vmul.f32 %v247, %v352
    %v356 = vsel %vm258, %v355, 0.0
    %357 = vadd.xlane.f32.xlu0 %v356
    %v358 = vpop.xlane.xlu0 %357
    %v359 = vadd.f32 %v269, %v358
    %vm360 = vcmask 3072
    %361 = vst.msk [vmem:[%s9] sm:$0xf] %vm360, %v359
    // Predicated region
    $region50: #{tpu_custom_call.1} parent=1 // pred_check
      _
    $region51: #{tpu_custom_call.1} parent=1 // pred_check_branch
      %363 = sbr.rel (0) target = $region53
    $region52: #{tpu_custom_call.1} parent=1 // pred_region
      _
    $region53: #{tpu_custom_call.1} parent=1 // pred_fallthru
      _
    // Predicated region
    $region54: #{tpu_custom_call.1} parent=1 // pred_check
      _
    $region55: #{tpu_custom_call.1} parent=1 // pred_check_branch
      %365 = sbr.rel (0) target = $region57
    $region56: #{tpu_custom_call.1} parent=1 // pred_region
      _
    $region57: #{tpu_custom_call.1} parent=1 // pred_fallthru
      _
    %366 = vsyncpa [#allocation4], 1
    %367 = vsyncpa [#allocation6], 1

</llo_original>
